<compile_context>
chip_gen: v6e
topology: v6e:2x2x1
jax: 0.10.0
libtpu: 0.0.40
codegen_flags: <defaults>
</compile_context>

<pallas_src>
import functools
import math

import jax
import jax.numpy as jnp
from jax.experimental import pallas as pl
from jax.experimental.pallas import tpu as pltpu


def _round_up(x, m):
    return ((x + m - 1) // m) * m


# ---------------------------------------------------------------------------
# Kernel
# ---------------------------------------------------------------------------
def _fused_stack_kernel(*refs, mxu_dtype):
    """refs = (x_ref, w1_ref, b1_ref, w2_ref, b2_ref, ..., o_ref).

    x_ref:  (B_TILE, N*F_in0)
    w_ref:  (N*F_in_l, N*F_out_l)   block-diagonal weight for layer l
    b_ref:  (1, N*F_out_l)          lane-dense bias for layer l
    o_ref:  (B_TILE, N*F_out_last_padded)
    """
    x_ref = refs[0]
    o_ref = refs[-1]
    wb_refs = refs[1:-1]

    x = x_ref[...].astype(jnp.float32)
    # Static Python unroll over layers (traced once). Activations stay in f32
    # vregs; sigmoid (EUP) -> matmul (MXU) -> bias add (VPU) per layer.
    for i in range(0, len(wb_refs), 2):
        w = wb_refs[i][...]
        b = wb_refs[i + 1][...].astype(jnp.float32)
        s = jax.nn.sigmoid(x)                      # f32 sigmoid (v5e-safe)
        x = jnp.dot(s.astype(mxu_dtype), w.astype(mxu_dtype),
                    preferred_element_type=jnp.float32) + b
    o_ref[...] = x.astype(o_ref.dtype)


# ---------------------------------------------------------------------------
# One-time parameter packing (hoisted out of the forward path)
# ---------------------------------------------------------------------------
def _block_diag(w):
    """(N, F_in, F_out) -> (N*F_in, N*F_out) block-diagonal weight."""
    N, Fi, Fo = w.shape
    eye = jnp.eye(N, dtype=w.dtype)
    # out[n*Fi + i, m*Fo + o] = w[n, i, o] * eye[n, m]
    return jnp.einsum('nio,nm->nimo', w, eye).reshape(N * Fi, N * Fo)


def pack_params(params, weight_dtype=None, lane_pad=128):
    """Pre-pack per-group params into block-diagonal, lane-dense arrays.

    Returns (packed, nf_out) where packed = [(W_bd, b_row), ...] and nf_out is
    the true (unpadded) N*F_out of the last layer.
    """
    packed = []
    n_layers = len(params)
    nf_out = params[-1][0].shape[0] * params[-1][0].shape[2]
    for li, (w, b) in enumerate(params):
        W = _block_diag(w)                 # (N*Fi, N*Fo)
        B = b.reshape(1, -1)               # (1, N*Fo)
        if li == n_layers - 1 and lane_pad:
            nf = W.shape[1]
            nf_p = _round_up(nf, lane_pad)
            if nf_p != nf:                 # zero-pad -> unmasked lane stores
                W = jnp.pad(W, ((0, 0), (0, nf_p - nf)))
                B = jnp.pad(B, ((0, 0), (0, nf_p - nf)))
        if weight_dtype is not None:
            W = W.astype(weight_dtype)
        packed.append((W, B))
    return packed, nf_out


# ---------------------------------------------------------------------------
# Forward
# ---------------------------------------------------------------------------
def forward_A(x_bnf, packed, nf_out, *, b_tile=None, mxu_dtype=jnp.float32):
    """x_bnf: (batch, num_linear, dim[1]) — PyTorch layout. Returns same layout."""
    B, N, F0 = x_bnf.shape
    NF0 = N * F0
    x_flat = x_bnf.reshape(B, NF0)         # free row-major view, matches block-diag

    # Batch tile: multiple of 8, big enough to fill MXU rows, capped for VMEM.
    if b_tile is None:
        b_tile = min(256, _round_up(B, 8))
    b_tile = max(8, _round_up(b_tile, 8))
    B_pad = _round_up(B, b_tile)
    if B_pad != B:
        x_flat = jnp.pad(x_flat, ((0, B_pad - B), (0, 0)))

    NF_last_pad = packed[-1][0].shape[1]

    inputs = [x_flat]
    in_specs = [pl.BlockSpec((b_tile, NF0), lambda i: (i, 0))]
    for W, bvec in packed:
        inputs.append(W)
        inputs.append(bvec)
        in_specs.append(pl.BlockSpec(W.shape, lambda i: (0, 0)))      # resident
        in_specs.append(pl.BlockSpec(bvec.shape, lambda i: (0, 0)))   # resident

    out_flat = pl.pallas_call(
        functools.partial(_fused_stack_kernel, mxu_dtype=mxu_dtype),
        out_shape=jax.ShapeDtypeStruct((B_pad, NF_last_pad), x_bnf.dtype),
        grid=(B_pad // b_tile,),
        in_specs=in_specs,
        out_specs=pl.BlockSpec((b_tile, NF_last_pad), lambda i: (i, 0)),
        compiler_params=pltpu.CompilerParams(
            dimension_semantics=("parallel",)),
    )(*inputs)

    out_flat = out_flat[:B, :nf_out]
    return out_flat.reshape(B, N, nf_out // N)


# ---------------------------------------------------------------------------
# Init + plain-JAX reference
# ---------------------------------------------------------------------------
def init_params(key, dim, dtype=jnp.float32):
    """Matches L.reset_parameters: U(-sqrt(1/in_f), sqrt(1/in_f))."""
    params = []
    num_linear = dim[0]
    for i in range(len(dim) - 2):
        in_f, out_f = dim[i + 1], dim[i + 2]
        bound = math.sqrt(1.0 / in_f)
        key, kw, kb = jax.random.split(key, 3)
        w = jax.random.uniform(kw, (num_linear, in_f, out_f), dtype,
                               minval=-bound, maxval=bound)
        b = jax.random.uniform(kb, (num_linear, out_f), dtype,
                               minval=-bound, maxval=bound)
        params.append((w, b))
    return params


def forward_A_ref(x_bnf, params):
    """Plain-JAX reference mirroring the PyTorch module."""
    x = x_bnf
    for w, b in params:
        s = jax.nn.sigmoid(x)                      # (B, N, F_in)
        out = jnp.einsum('bni,nio->bno', s, w)     # per-group matmul
        x = out + b[None, :, :]
    return x


if __name__ == "__main__":
    # dim[0] = num_linear, then feature sizes per layer: [N, F0, F1, F2]
    dim = [4, 16, 32, 16]
    batch = 8

    key = jax.random.PRNGKey(0)
    key, kx = jax.random.split(key)
    x = jax.random.normal(kx, (batch, dim[0], dim[1]), jnp.float32)

    params = init_params(jax.random.PRNGKey(0), dim, jnp.float32)

    # Pack once (block-diag fold, bias reshape, lane padding) — hoisted from
    # the forward path. On v6e/v7x, pass weight_dtype=jnp.bfloat16 and
    # mxu_dtype=jnp.bfloat16 once the batch grid makes the kernel MXU-bound.
    packed, nf_out = pack_params(params, weight_dtype=None, lane_pad=128)

    out = jax.block_until_ready(forward_A(x, packed, nf_out,
                                          mxu_dtype=jnp.float32))
    ref = jax.block_until_ready(forward_A_ref(x, params))

    assert out.shape == (batch, dim[0], dim[-1]), out.shape
    assert jnp.allclose(out, ref, atol=1e-4, rtol=1e-4), "mismatch vs reference"
    print("KERNEL_OK")
</pallas_src>

<mosaic_0001>
module attributes {stable_mosaic.version = 11 : i64} {
  func.func @_fused_stack_kernel(%arg0: i32, %arg1: memref<8x64xf32, #tpu.memory_space<vmem>>, %arg2: memref<64x128xf32, #tpu.memory_space<vmem>>, %arg3: memref<1x128xf32, #tpu.memory_space<vmem>>, %arg4: memref<128x128xf32, #tpu.memory_space<vmem>>, %arg5: memref<1x128xf32, #tpu.memory_space<vmem>>, %arg6: memref<8x128xf32, #tpu.memory_space<vmem>>) attributes {dimension_semantics = [#tpu.dimension_semantics<parallel>], iteration_bounds = array<i64: 1>, scalar_prefetch = 0 : i64, scratch_operands = 0 : i64, tpu.core_type = #tpu.core_type<tc>, window_params = [{transform_indices = @transform_0, window_bounds = array<i64: 8, 64>}, {pipeline_mode = #tpu.pipeline_mode<synchronous>, transform_indices = @transform_1, window_bounds = array<i64: 64, 128>}, {pipeline_mode = #tpu.pipeline_mode<synchronous>, transform_indices = @transform_2, window_bounds = array<i64: 1, 128>}, {pipeline_mode = #tpu.pipeline_mode<synchronous>, transform_indices = @transform_3, window_bounds = array<i64: 128, 128>}, {pipeline_mode = #tpu.pipeline_mode<synchronous>, transform_indices = @transform_4, window_bounds = array<i64: 1, 128>}, {transform_indices = @transform_5, window_bounds = array<i64: 8, 128>}]} {
    %c0 = arith.constant 0 : index
    %c0_0 = arith.constant 0 : index
    %0 = vector.load %arg1[%c0, %c0_0] : memref<8x64xf32, #tpu.memory_space<vmem>>, vector<8x64xf32>
    %c0_1 = arith.constant 0 : index
    %c0_2 = arith.constant 0 : index
    %1 = vector.load %arg2[%c0_1, %c0_2] : memref<64x128xf32, #tpu.memory_space<vmem>>, vector<64x128xf32>
    %c0_3 = arith.constant 0 : index
    %c0_4 = arith.constant 0 : index
    %2 = vector.load %arg3[%c0_3, %c0_4] : memref<1x128xf32, #tpu.memory_space<vmem>>, vector<1x128xf32>
    %3 = arith.negf %0 : vector<8x64xf32>
    %4 = math.exp %3 : vector<8x64xf32>
    %cst = arith.constant 1.000000e+00 : f32
    %5 = vector.broadcast %cst : f32 to vector<8x64xf32>
    %6 = arith.addf %5, %4 : vector<8x64xf32>
    %7 = arith.divf %5, %6 : vector<8x64xf32>
    %cst_5 = arith.constant dense<0.000000e+00> : vector<8x128xf32>
    %8 = tpu.matmul %7, %1, %cst_5 {dimension_numbers = #tpu.dot_dimension_numbers<[1], [0], [0], [1], [0, 0, 1, 1], [], []>} : vector<8x64xf32>, vector<64x128xf32>, vector<8x128xf32> -> vector<8x128xf32>
    %9 = vector.broadcast %2 : vector<1x128xf32> to vector<8x128xf32>
    %10 = arith.addf %8, %9 : vector<8x128xf32>
    %c0_6 = arith.constant 0 : index
    %c0_7 = arith.constant 0 : index
    %11 = vector.load %arg4[%c0_6, %c0_7] : memref<128x128xf32, #tpu.memory_space<vmem>>, vector<128x128xf32>
    %c0_8 = arith.constant 0 : index
    %c0_9 = arith.constant 0 : index
    %12 = vector.load %arg5[%c0_8, %c0_9] : memref<1x128xf32, #tpu.memory_space<vmem>>, vector<1x128xf32>
    %13 = arith.negf %10 : vector<8x128xf32>
    %14 = math.exp %13 : vector<8x128xf32>
    %cst_10 = arith.constant 1.000000e+00 : f32
    %15 = vector.broadcast %cst_10 : f32 to vector<8x128xf32>
    %16 = arith.addf %15, %14 : vector<8x128xf32>
    %17 = arith.divf %15, %16 : vector<8x128xf32>
    %cst_11 = arith.constant dense<0.000000e+00> : vector<8x128xf32>
    %18 = tpu.matmul %17, %11, %cst_11 {dimension_numbers = #tpu.dot_dimension_numbers<[1], [0], [0], [1], [0, 0, 1, 1], [], []>} : vector<8x128xf32>, vector<128x128xf32>, vector<8x128xf32> -> vector<8x128xf32>
    %19 = vector.broadcast %12 : vector<1x128xf32> to vector<8x128xf32>
    %20 = arith.addf %18, %19 : vector<8x128xf32>
    %c0_12 = arith.constant 0 : index
    %c0_13 = arith.constant 0 : index
    %21 = vector.load %arg6[%c0_12, %c0_13] : memref<8x128xf32, #tpu.memory_space<vmem>>, vector<8x128xf32>
    tpu.vector_store %arg6[%c0_12, %c0_13], %20 {strides = array<i32>} : memref<8x128xf32, #tpu.memory_space<vmem>>, vector<8x128xf32>,
    return
  }
  func.func @transform_0(%arg0: i32) -> (i32, i32) {
    %c0_i32 = arith.constant 0 : i32
    %c0_i32_0 = arith.constant 0 : i32
    return %arg0, %c0_i32 : i32, i32
  }
  func.func @transform_1(%arg0: i32) -> (i32, i32) {
    %c0_i32 = arith.constant 0 : i32
    %c0_i32_0 = arith.constant 0 : i32
    %c0_i32_1 = arith.constant 0 : i32
    return %c0_i32, %c0_i32_0 : i32, i32
  }
  func.func @transform_2(%arg0: i32) -> (i32, i32) {
    %c0_i32 = arith.constant 0 : i32
    %c0_i32_0 = arith.constant 0 : i32
    %c0_i32_1 = arith.constant 0 : i32
    return %c0_i32, %c0_i32_0 : i32, i32
  }
  func.func @transform_3(%arg0: i32) -> (i32, i32) {
    %c0_i32 = arith.constant 0 : i32
    %c0_i32_0 = arith.constant 0 : i32
    %c0_i32_1 = arith.constant 0 : i32
    return %c0_i32, %c0_i32_0 : i32, i32
  }
  func.func @transform_4(%arg0: i32) -> (i32, i32) {
    %c0_i32 = arith.constant 0 : i32
    %c0_i32_0 = arith.constant 0 : i32
    %c0_i32_1 = arith.constant 0 : i32
    return %c0_i32, %c0_i32_0 : i32, i32
  }
  func.func @transform_5(%arg0: i32) -> (i32, i32) {
    %c0_i32 = arith.constant 0 : i32
    %c0_i32_0 = arith.constant 0 : i32
    return %arg0, %c0_i32 : i32, i32
  }
}

</mosaic_0001>

<llo_original>
// kernel: tpu_custom_call.1
$region0: #{tpu_custom_call.1}
  #allocation0 [shape = 'u32[]', space=smem, size = 0x4, offset = 0x4, fixed_abs, tag = 'smem constant byte address 0x4 - core index']
  #allocation1 [shape = 'u32[144,128]{1,0:T(1,128)}', space=vmem, size = 0x12000, scoped, tag = 'internal scratch']
  %s0 = inlined_call_operand.hbm [shape: f32[8,64], index: 0, kind: input, shape index: {}]
  %s1 = inlined_call_operand.hbm [shape: f32[64,128], index: 1, kind: input, shape index: {}]
  %s2 = inlined_call_operand.vmem [shape: f32[1,128], index: 2, kind: input, shape index: {}]
  %s3 = inlined_call_operand.hbm [shape: f32[128,128], index: 3, kind: input, shape index: {}]
  %s4 = inlined_call_operand.vmem [shape: f32[1,128], index: 4, kind: input, shape index: {}]
  %s5 = inlined_call_operand.hbm [shape: f32[8,128], index: 5, kind: output, shape index: {}]
  %s6 = sld [smem:[#allocation0]]
  $region42: #{tpu_custom_call.1} parent=0
    _
  %s8 = ssub.s32 1, %s6
  %s9 = scalar_select 0, %s8, %s6
  $region1: #{tpu_custom_call.1} parent=0
    #allocation2 [shape = 'u8[4096]{0}', space=vmem, size = 0x1000, scoped, tag = 'input window, operand 0, single buffered']
    #allocation3 [shape = 's32[1]{0}', space=sflag, size = 0x4, scoped, tag = 'scoped memory for tpu_custom_call.1']
    #allocation4 [shape = 's32[1]{0}', space=sflag, size = 0x4, scoped, tag = 'scoped memory for tpu_custom_call.1']
    #allocation5 [shape = 'u8[32768]{0}', space=vmem, size = 0x8000, scoped, tag = 'input window, operand 1, single buffered']
    #allocation6 [shape = 's32[1]{0}', space=sflag, size = 0x4, scoped, tag = 'scoped memory for tpu_custom_call.1']
    #allocation7 [shape = 'u8[65536]{0}', space=vmem, size = 0x10000, scoped, tag = 'input window, operand 3, single buffered']
    #allocation8 [shape = 'u8[4096]{0}', space=vmem, size = 0x1000, scoped, tag = 'output window, operand 0, single buffered']
    %10 = vsyncpa [#allocation3], 0
    %11 = vsyncpa [#allocation6], 0
    %12 = vsyncpa [#allocation4], 0
    // Predicated region
    $region2: #{tpu_custom_call.1} parent=1 // pred_check
      _
    $region3: #{tpu_custom_call.1} parent=1 // pred_check_branch
      %14 = sbr.rel (0) target = $region5
    $region4: #{tpu_custom_call.1} parent=1 // pred_region
      %s16 = ssub.s32 128, 128
      %17 = vsyncadd [#allocation3], %s16
      %s19 = sshll.u32 [#allocation2], 4
      %s20 = int_to_ptr.vmem [resolvable:$true] %s19
      %22 = dma.hbm_to_vmem [thread:$0]  %s0, 128, %s20, [#allocation3]
    $region5: #{tpu_custom_call.1} parent=1 // pred_fallthru
      _
    // Predicated region
    $region6: #{tpu_custom_call.1} parent=1 // pred_check
      _
    $region7: #{tpu_custom_call.1} parent=1 // pred_check_branch
      %24 = sbr.rel (0) target = $region9
    $region8: #{tpu_custom_call.1} parent=1 // pred_region
      %s26 = ssub.s32 1024, 1024
      %27 = vsyncadd [#allocation6], %s26
      %s28 = sshll.u32 [#allocation5], 4
      %s29 = int_to_ptr.vmem [resolvable:$true] %s28
      %34 = dma.hbm_to_vmem [thread:$0]  %s1, 1024, %s29, [#allocation6], 128, 128, 8
    $region9: #{tpu_custom_call.1} parent=1 // pred_fallthru
      _
    // Predicated region
    $region10: #{tpu_custom_call.1} parent=1 // pred_check
      _
    $region11: #{tpu_custom_call.1} parent=1 // pred_check_branch
      %36 = sbr.rel (0) target = $region13
    $region12: #{tpu_custom_call.1} parent=1 // pred_region
      _
    $region13: #{tpu_custom_call.1} parent=1 // pred_fallthru
      _
    // Predicated region
    $region14: #{tpu_custom_call.1} parent=1 // pred_check
      _
    $region15: #{tpu_custom_call.1} parent=1 // pred_check_branch
      %38 = sbr.rel (0) target = $region17
    $region16: #{tpu_custom_call.1} parent=1 // pred_region
      %s40 = ssub.s32 2048, 2048
      %41 = vsyncadd [#allocation6], %s40
      %s42 = sshll.u32 [#allocation7], 4
      %s43 = int_to_ptr.vmem [resolvable:$true] %s42
      %48 = dma.hbm_to_vmem [thread:$0]  %s3, 2048, %s43, [#allocation6], 128, 128, 8
    $region17: #{tpu_custom_call.1} parent=1 // pred_fallthru
      _
    // Predicated region
    $region18: #{tpu_custom_call.1} parent=1 // pred_check
      _
    $region19: #{tpu_custom_call.1} parent=1 // pred_check_branch
      %50 = sbr.rel (0) target = $region21
    $region20: #{tpu_custom_call.1} parent=1 // pred_region
      _
    $region21: #{tpu_custom_call.1} parent=1 // pred_fallthru
      _
    // Predicated region
    $region22: #{tpu_custom_call.1} parent=1 // pred_check
      _
    $region23: #{tpu_custom_call.1} parent=1 // pred_check_branch
      %52 = sbr.rel (0) target = $region25
    $region24: #{tpu_custom_call.1} parent=1 // pred_region
      %53 = dma.done [#allocation3], 128
    $region25: #{tpu_custom_call.1} parent=1 // pred_fallthru
      _
    // Predicated region
    $region26: #{tpu_custom_call.1} parent=1 // pred_check
      _
    $region27: #{tpu_custom_call.1} parent=1 // pred_check_branch
      %55 = sbr.rel (0) target = $region29
    $region28: #{tpu_custom_call.1} parent=1 // pred_region
      %56 = dma.done [#allocation6], 1024
    $region29: #{tpu_custom_call.1} parent=1 // pred_fallthru
      _
    // Predicated region
    $region30: #{tpu_custom_call.1} parent=1 // pred_check
      _
    $region31: #{tpu_custom_call.1} parent=1 // pred_check_branch
      %58 = sbr.rel (0) target = $region33
    $region32: #{tpu_custom_call.1} parent=1 // pred_region
      %59 = dma.done [#allocation6], 2048
    $region33: #{tpu_custom_call.1} parent=1 // pred_fallthru
      _
    %v60 = vld [vmem:[#allocation2] sm:$0xff]
    %v61 = vld [vmem:[#allocation5] sm:$0xff]
    %v62 = vld [vmem:[#allocation5 + $0x8] sm:$0xff]
    %v63 = vld [vmem:[#allocation5 + $0x10] sm:$0xff]
    %v64 = vld [vmem:[#allocation5 + $0x18] sm:$0xff]
    %v65 = vld [vmem:[#allocation5 + $0x20] sm:$0xff]
    %v66 = vld [vmem:[#allocation5 + $0x28] sm:$0xff]
    %v67 = vld [vmem:[#allocation5 + $0x30] sm:$0xff]
    %v68 = vld [vmem:[#allocation5 + $0x38] sm:$0xff]
    %v69 = vld [vmem:[%s2] sm:$0x1]
    %v70 = vxor.u32 %v60, 2147483648
    %v71 = vmul.f32 %v70, 1.442695
    %v72 = vpow.pop %v71
    %v73 = vadd.f32 %v72, 1.0
    %v74 = vrcp.pop %v73
    %v75 = vmul.f32 1.0, %v74
    %v77 = vlaneseq
    %v78 = vshrl.u32 %v77, 7
    %v79 = vsub.s32 0, %v78
    %v80 = vrot.slane %v69, %v79
    %vm82 = vcmask 523264
    %v84 = vsel %vm82, %v75, 0
    %86 = vmatprep.subr.mxu0 0.0
    %87 = vmatpush1.msra.mxu0 0.0
    %88 = vmatprep.subr.mxu0 0.0
    %89 = vmatpush1.msra.mxu0 0.0
    %90 = vmatprep.subr.mxu0 0.0
    %91 = vmatpush1.msra.mxu0 0.0
    %92 = vmatprep.subr.mxu0 0.0
    %93 = vmatpush1.msra.mxu0 0.0
    %94 = vmatprep.subr.mxu0 0.0
    %95 = vmatpush1.msra.mxu0 0.0
    %96 = vmatprep.subr.mxu0 0.0
    %97 = vmatpush1.msra.mxu0 0.0
    %98 = vmatprep.subr.mxu0 0.0
    %99 = vmatpush1.msra.mxu0 0.0
    %100 = vmatprep.subr.mxu0 0.0
    %101 = vmatpush1.msra.mxu0 0.0
    %102 = vmatprep.subr.mxu0 0.0
    %103 = vmatpush1.msra.mxu0 %v68
    %104 = vmatprep.subr.mxu0 0.0
    %105 = vmatpush1.msra.mxu0 %v67
    %106 = vmatprep.subr.mxu0 0.0
    %107 = vmatpush1.msra.mxu0 %v66
    %108 = vmatprep.subr.mxu0 0.0
    %109 = vmatpush1.msra.mxu0 %v65
    %110 = vmatprep.subr.mxu0 0.0
    %111 = vmatpush1.msra.mxu0 %v64
    %112 = vmatprep.subr.mxu0 0.0
    %113 = vmatpush1.msra.mxu0 %v63
    %114 = vmatprep.subr.mxu0 0.0
    %115 = vmatpush1.msra.mxu0 %v62
    %116 = vmatprep.subr.mxu0 0.0
    %117 = vmatpush1.msra.mxu0 %v61
    %118 = vmatprep.subr.mxu0 0.0
    %119 = vmatpush2.msra.mxu0 0.0
    %120 = vmatprep.subr.mxu0 0.0
    %121 = vmatpush2.msra.mxu0 0.0
    %122 = vmatprep.subr.mxu0 0.0
    %123 = vmatpush2.msra.mxu0 0.0
    %124 = vmatprep.subr.mxu0 0.0
    %125 = vmatpush2.msra.mxu0 0.0
    %126 = vmatprep.subr.mxu0 0.0
    %127 = vmatpush2.msra.mxu0 0.0
    %128 = vmatprep.subr.mxu0 0.0
    %129 = vmatpush2.msra.mxu0 0.0
    %130 = vmatprep.subr.mxu0 0.0
    %131 = vmatpush2.msra.mxu0 0.0
    %132 = vmatprep.subr.mxu0 0.0
    %133 = vmatpush2.msra.mxu0 0.0
    %134 = vmatprep.subr.mxu0 0.0
    %135 = vmatpush2.msra.mxu0 0.0
    %136 = vmatprep.subr.mxu0 0.0
    %137 = vmatpush2.msra.mxu0 0.0
    %138 = vmatprep.subr.mxu0 0.0
    %139 = vmatpush2.msra.mxu0 0.0
    %140 = vmatprep.subr.mxu0 0.0
    %141 = vmatpush2.msra.mxu0 0.0
    %142 = vmatprep.subr.mxu0 0.0
    %143 = vmatpush2.msra.mxu0 0.0
    %144 = vmatprep.subr.mxu0 0.0
    %145 = vmatpush2.msra.mxu0 0.0
    %146 = vmatprep.subr.mxu0 0.0
    %147 = vmatpush2.msra.mxu0 0.0
    %148 = vmatprep.subr.mxu0 0.0
    %149 = vmatpush2.msra.mxu0 0.0
    %150 = vmatprep.mubr.f32.mxu0 0.0
    %151 = vmatmul.mubr.f32.gmra.mxu0 %v84
    %v152 = vpop.f32.mrf.mxu0
    %v153 = vadd.f32 %v80, %v152
    %v154 = vpop.f32.mrf.mxu0
    %155 = vdwg.mxu0
    %v156 = vld [vmem:[#allocation7] sm:$0xff]
    %v157 = vld [vmem:[#allocation7 + $0x8] sm:$0xff]
    %v158 = vld [vmem:[#allocation7 + $0x10] sm:$0xff]
    %v159 = vld [vmem:[#allocation7 + $0x18] sm:$0xff]
    %v160 = vld [vmem:[#allocation7 + $0x20] sm:$0xff]
    %v161 = vld [vmem:[#allocation7 + $0x28] sm:$0xff]
    %v162 = vld [vmem:[#allocation7 + $0x30] sm:$0xff]
    %v163 = vld [vmem:[#allocation7 + $0x38] sm:$0xff]
    %v164 = vld [vmem:[#allocation7 + $0x40] sm:$0xff]
    %v165 = vld [vmem:[#allocation7 + $0x48] sm:$0xff]
    %v166 = vld [vmem:[#allocation7 + $0x50] sm:$0xff]
    %v167 = vld [vmem:[#allocation7 + $0x58] sm:$0xff]
    %v168 = vld [vmem:[#allocation7 + $0x60] sm:$0xff]
    %v169 = vld [vmem:[#allocation7 + $0x68] sm:$0xff]
    %v170 = vld [vmem:[#allocation7 + $0x70] sm:$0xff]
    %v171 = vld [vmem:[#allocation7 + $0x78] sm:$0xff]
    %v172 = vld [vmem:[%s4] sm:$0x1]
    %v173 = vxor.u32 %v153, 2147483648
    %v174 = vmul.f32 %v173, 1.442695
    %v175 = vpow.pop %v174
    %v176 = vadd.f32 %v175, 1.0
    %v177 = vrcp.pop %v176
    %v178 = vmul.f32 1.0, %v177
    %v180 = vlaneseq
    %v181 = vshrl.u32 %v180, 7
    %v182 = vsub.s32 0, %v181
    %v183 = vrot.slane %v172, %v182
    %185 = vmatprep.subr.mxu0 0.0
    %186 = vmatpush1.msra.mxu0 %v171
    %187 = vmatprep.subr.mxu0 0.0
    %188 = vmatpush1.msra.mxu0 %v170
    %189 = vmatprep.subr.mxu0 0.0
    %190 = vmatpush1.msra.mxu0 %v169
    %191 = vmatprep.subr.mxu0 0.0
    %192 = vmatpush1.msra.mxu0 %v168
    %193 = vmatprep.subr.mxu0 0.0
    %194 = vmatpush1.msra.mxu0 %v167
    %195 = vmatprep.subr.mxu0 0.0
    %196 = vmatpush1.msra.mxu0 %v166
    %197 = vmatprep.subr.mxu0 0.0
    %198 = vmatpush1.msra.mxu0 %v165
    %199 = vmatprep.subr.mxu0 0.0
    %200 = vmatpush1.msra.mxu0 %v164
    %201 = vmatprep.subr.mxu0 0.0
    %202 = vmatpush1.msra.mxu0 %v163
    %203 = vmatprep.subr.mxu0 0.0
    %204 = vmatpush1.msra.mxu0 %v162
    %205 = vmatprep.subr.mxu0 0.0
    %206 = vmatpush1.msra.mxu0 %v161
    %207 = vmatprep.subr.mxu0 0.0
    %208 = vmatpush1.msra.mxu0 %v160
    %209 = vmatprep.subr.mxu0 0.0
    %210 = vmatpush1.msra.mxu0 %v159
    %211 = vmatprep.subr.mxu0 0.0
    %212 = vmatpush1.msra.mxu0 %v158
    %213 = vmatprep.subr.mxu0 0.0
    %214 = vmatpush1.msra.mxu0 %v157
    %215 = vmatprep.subr.mxu0 0.0
    %216 = vmatpush1.msra.mxu0 %v156
    %217 = vmatprep.subr.mxu0 0.0
    %218 = vmatpush2.msra.mxu0 0.0
    %219 = vmatprep.subr.mxu0 0.0
    %220 = vmatpush2.msra.mxu0 0.0
    %221 = vmatprep.subr.mxu0 0.0
    %222 = vmatpush2.msra.mxu0 0.0
    %223 = vmatprep.subr.mxu0 0.0
    %224 = vmatpush2.msra.mxu0 0.0
    %225 = vmatprep.subr.mxu0 0.0
    %226 = vmatpush2.msra.mxu0 0.0
    %227 = vmatprep.subr.mxu0 0.0
    %228 = vmatpush2.msra.mxu0 0.0
    %229 = vmatprep.subr.mxu0 0.0
    %230 = vmatpush2.msra.mxu0 0.0
    %231 = vmatprep.subr.mxu0 0.0
    %232 = vmatpush2.msra.mxu0 0.0
    %233 = vmatprep.subr.mxu0 0.0
    %234 = vmatpush2.msra.mxu0 0.0
    %235 = vmatprep.subr.mxu0 0.0
    %236 = vmatpush2.msra.mxu0 0.0
    %237 = vmatprep.subr.mxu0 0.0
    %238 = vmatpush2.msra.mxu0 0.0
    %239 = vmatprep.subr.mxu0 0.0
    %240 = vmatpush2.msra.mxu0 0.0
    %241 = vmatprep.subr.mxu0 0.0
    %242 = vmatpush2.msra.mxu0 0.0
    %243 = vmatprep.subr.mxu0 0.0
    %244 = vmatpush2.msra.mxu0 0.0
    %245 = vmatprep.subr.mxu0 0.0
    %246 = vmatpush2.msra.mxu0 0.0
    %247 = vmatprep.subr.mxu0 0.0
    %248 = vmatpush2.msra.mxu0 0.0
    %249 = vmatprep.mubr.f32.mxu0 0.0
    %250 = vmatmul.mubr.f32.gmra.mxu0 %v178
    %v251 = vpop.f32.mrf.mxu0
    %v252 = vadd.f32 %v183, %v251
    %v253 = vpop.f32.mrf.mxu0
    %254 = vdwg.mxu0
    %255 = vst [vmem:[#allocation8] sm:$0xff] %v252
    // Predicated region
    $region34: #{tpu_custom_call.1} parent=1 // pred_check
      _
    $region35: #{tpu_custom_call.1} parent=1 // pred_check_branch
      %257 = sbr.rel (0) target = $region37
    $region36: #{tpu_custom_call.1} parent=1 // pred_region
      %s259 = ssub.s32 128, 128
      %260 = vsyncadd [#allocation4], %s259
      %s262 = sshll.u32 [#allocation8], 4
      %s263 = int_to_ptr.vmem [resolvable:$true] %s262
      %265 = dma.vmem_to_hbm [thread:$0]  %s263, 128, %s5, [#allocation4]
    $region37: #{tpu_custom_call.1} parent=1 // pred_fallthru
      _
    // Predicated region
    $region38: #{tpu_custom_call.1} parent=1 // pred_check
      _
    $region39: #{tpu_custom_call.1} parent=1 // pred_check_branch
      %267 = sbr.rel (0) target = $region41
    $region40: #{tpu_custom_call.1} parent=1 // pred_region
      %268 = dma.done [#allocation4], 128
    $region41: #{tpu_custom_call.1} parent=1 // pred_fallthru
      _
    %269 = vsyncpa [#allocation3], 1
    %270 = vsyncpa [#allocation6], 1
    %271 = vsyncpa [#allocation4], 1

</llo_original>
